<compile_context>
chip_gen: v7x
topology: tpu7x:2x2x1
jax: 0.10.0
libtpu: 0.0.40
codegen_flags: <defaults>
</compile_context>

<pallas_src>
from functools import partial

import jax
import jax.numpy as jnp
from jax.experimental import pallas as pl
from jax.experimental.pallas import tpu as pltpu

EPS = 1e-5
_SQRT1_2 = 0.7071067811865476  # 1/sqrt(2)


def poolformer_kernel(x_ref, p_ref, o_ref, *, B, C, HID, H, W):
    HW = H * W
    BC = B * C
    BH = B * HID
    inv_c = 1.0 / C

    # ---- packed parameters (single DMA), static ref slices ----
    w1 = p_ref[0:BH, 0:BC]             # kron(W1, I_B): (B*HID, B*C)
    w2 = p_ref[BH:BH + BC, 0:BH]       # kron(W2, I_B): (B*C, B*HID)
    b1 = p_ref[0:BH, BC:BC + 1]        # (B*HID, 1)
    g1 = p_ref[0:BC, BC + 1:BC + 2]    # (B*C, 1)
    be1 = p_ref[0:BC, BC + 2:BC + 3]
    g2 = p_ref[0:BC, BC + 3:BC + 4]
    be2 = p_ref[0:BC, BC + 4:BC + 5]
    b2 = p_ref[0:BC, BC + 5:BC + 6]

    # ---- pooling boundary masks + exact reciprocal valid counts (in-kernel) ----
    pos = jax.lax.broadcasted_iota(jnp.int32, (1, HW), 1)
    if (W & (W - 1)) == 0:             # static: power-of-two spatial width
        wi = pos & (W - 1)
        hi = pos >> (W.bit_length() - 1)
    else:
        wi = pos % W
        hi = pos // W
    m_w0 = jnp.where(wi > 0, 1.0, 0.0)          # left  (w-1) neighbor valid
    m_wL = jnp.where(wi < W - 1, 1.0, 0.0)      # right (w+1) neighbor valid
    m_h0 = jnp.where(hi > 0, 1.0, 0.0)          # top   (h-1) neighbor valid
    m_hL = jnp.where(hi < H - 1, 1.0, 0.0)      # bottom(h+1) neighbor valid
    # count_include_pad=False divisor factorizes per axis
    inv_cnt = 1.0 / ((1.0 + m_w0 + m_wL) * (1.0 + m_h0 + m_hL))

    def csum(v):
        # Per-batch channel sum on the interleaved (row = c*B + b) layout:
        # circular sublane rolls by multiples of B stay within the same batch.
        acc = v
        for k in range(1, C):
            acc = acc + pltpu.roll(v, k * B, axis=0)
        return acc

    def cln(v, g, b):
        u = csum(v) * inv_c
        d = v - u
        var = csum(d * d) * inv_c
        return d * jax.lax.rsqrt(var + EPS) * g + b

    x = x_ref[...]                     # (B*C, HW) fused, lane-dense

    # ---- norm1 + 3x3 avg-pool token mixer (count_include_pad=False) + residual
    xn = cln(x, g1, be1)
    # roll(+1)[p] = xn[p-1] (left neighbor), roll(HW-1)[p] = xn[p+1] (right)
    sw = (xn
          + pltpu.roll(xn, 1, axis=1) * m_w0
          + pltpu.roll(xn, HW - 1, axis=1) * m_wL)
    # roll(+W) -> row above, roll(HW-W) -> row below
    sh = (sw
          + pltpu.roll(sw, W, axis=1) * m_h0
          + pltpu.roll(sw, HW - W, axis=1) * m_hL)
    x1 = x + sh * inv_cnt - xn

    # ---- norm2 + 1x1-conv MLP (exact erf GELU) + residual ----
    xn2 = cln(x1, g2, be2)
    h = jnp.dot(w1, xn2, preferred_element_type=jnp.float32) + b1   # (B*HID, HW)
    h = 0.5 * h * (1.0 + jax.lax.erf(h * _SQRT1_2))
    y = jnp.dot(w2, h, preferred_element_type=jnp.float32) + b2     # (B*C, HW)

    o_ref[...] = x1 + y


def poolformer_block(x_nchw, params):
    B, C, H, W = x_nchw.shape
    g1, be1, g2, be2, W1, b1, W2, b2 = params
    HID = W1.shape[0]
    HW = H * W
    BC = B * C
    BH = B * HID

    # Channel-major interleaved fused layout: row r = c*B + b (wrapper-side
    # layout plumbing; tiny transpose outside the kernel).
    x_f = jnp.transpose(x_nchw.reshape(B, C, HW), (1, 0, 2)).reshape(BC, HW)

    # One packed parameter slab -> single input DMA.
    eyeB = jnp.eye(B, dtype=jnp.float32)
    ncol = max(BH, BC + 6)
    slab = jnp.zeros((BH + BC, ncol), jnp.float32)
    slab = slab.at[:BH, :BC].set(jnp.kron(W1.astype(jnp.float32), eyeB))
    slab = slab.at[BH:, :BH].set(jnp.kron(W2.astype(jnp.float32), eyeB))
    slab = slab.at[:BH, BC].set(jnp.repeat(b1, B))
    slab = slab.at[:BC, BC + 1].set(jnp.repeat(g1, B))
    slab = slab.at[:BC, BC + 2].set(jnp.repeat(be1, B))
    slab = slab.at[:BC, BC + 3].set(jnp.repeat(g2, B))
    slab = slab.at[:BC, BC + 4].set(jnp.repeat(be2, B))
    slab = slab.at[:BC, BC + 5].set(jnp.repeat(b2, B))

    kernel = partial(poolformer_kernel, B=B, C=C, HID=HID, H=H, W=W)

    out_f = pl.pallas_call(
        kernel,
        out_shape=jax.ShapeDtypeStruct((BC, HW), jnp.float32),
        # no grid: single pipeline step, whole problem in one fused tile
        in_specs=[
            pl.BlockSpec((BC, HW), lambda: (0, 0)),          # fused activations
            pl.BlockSpec((BH + BC, ncol), lambda: (0, 0)),   # packed params slab
        ],
        out_specs=pl.BlockSpec((BC, HW), lambda: (0, 0)),
    )(x_f, slab)

    # un-interleave back to NCHW
    return jnp.transpose(out_f.reshape(C, B, HW), (1, 0, 2)).reshape(B, C, H, W)


def ref_forward(x, params):
    """Pure-JAX NCHW reference with an independent pooling implementation."""
    g1, be1, g2, be2, W1, b1, W2, b2 = params
    B, C, H, W = x.shape

    def cln(v, g, b):
        u = v.mean(1, keepdims=True)
        s = ((v - u) ** 2).mean(1, keepdims=True)
        return (v - u) / jnp.sqrt(s + EPS) * g[None, :, None, None] + b[None, :, None, None]

    xn = cln(x, g1, be1)
    rows = []
    for h in range(H):
        cols = []
        for w in range(W):
            h0, h1 = max(0, h - 1), min(H, h + 2)
            w0, w1 = max(0, w - 1), min(W, w + 2)
            cols.append(xn[:, :, h0:h1, w0:w1].mean(axis=(2, 3)))
        rows.append(jnp.stack(cols, axis=-1))
    pooled = jnp.stack(rows, axis=-2)                      # (B, C, H, W)
    x1 = x + pooled - xn

    xn2 = cln(x1, g2, be2)
    hp = jnp.einsum("kc,bchw->bkhw", W1, xn2,
                    precision=jax.lax.Precision.HIGHEST) + b1[None, :, None, None]
    hp = 0.5 * hp * (1.0 + jax.lax.erf(hp * _SQRT1_2))
    out = jnp.einsum("ck,bkhw->bchw", W2, hp,
                     precision=jax.lax.Precision.HIGHEST) + b2[None, :, None, None]
    return x1 + out


if __name__ == "__main__":
    # module config: embed_dim=4, pool_size=3, mlp_ratio=4 -> hidden=16
    B, C, H, W = 2, 4, 16, 16
    HID = int(C * 4.0)

    key = jax.random.PRNGKey(0)
    kx, k1, k2 = jax.random.split(key, 3)

    x_nchw = jax.random.normal(kx, (B, C, H, W), dtype=jnp.float32)

    # ChannelLayerNorm: ones/zeros; Mlp 1x1 convs: ~N(0, 0.02) weights, zero bias
    gamma1 = jnp.ones((C,), jnp.float32)
    beta1 = jnp.zeros((C,), jnp.float32)
    gamma2 = jnp.ones((C,), jnp.float32)
    beta2 = jnp.zeros((C,), jnp.float32)
    W1 = 0.02 * jax.random.normal(k1, (HID, C), dtype=jnp.float32)   # fc1: 1x1 conv C->HID
    b1 = jnp.zeros((HID,), jnp.float32)
    W2 = 0.02 * jax.random.normal(k2, (C, HID), dtype=jnp.float32)   # fc2: 1x1 conv HID->C
    b2 = jnp.zeros((C,), jnp.float32)
    params = (gamma1, beta1, gamma2, beta2, W1, b1, W2, b2)

    out = poolformer_block(x_nchw, params)
    out = jax.block_until_ready(out)

    ref = ref_forward(x_nchw, params)
    assert out.shape == (B, C, H, W)
    err = float(jnp.max(jnp.abs(out - ref)))
    assert err < 1e-4, err

    print("KERNEL_OK")
</pallas_src>

<mosaic_0001>
module attributes {stable_mosaic.version = 11 : i64} {
  func.func @poolformer_kernel(%arg0: memref<8x256xf32, #tpu.memory_space<vmem>>, %arg1: memref<40x32xf32, #tpu.memory_space<vmem>>, %arg2: memref<8x256xf32, #tpu.memory_space<vmem>>) attributes {dimension_semantics = [], scalar_prefetch = 0 : i64, scratch_operands = 0 : i64, tpu.core_type = #tpu.core_type<tc>} {
    %c0 = arith.constant 0 : index
    %c0_0 = arith.constant 0 : index
    %0 = vector.load %arg1[%c0, %c0_0] : memref<40x32xf32, #tpu.memory_space<vmem>>, vector<32x8xf32>
    %c32 = arith.constant 32 : index
    %c0_1 = arith.constant 0 : index
    %1 = vector.load %arg1[%c32, %c0_1] : memref<40x32xf32, #tpu.memory_space<vmem>>, vector<8x32xf32>
    %c0_2 = arith.constant 0 : index
    %c8 = arith.constant 8 : index
    %2 = vector.load %arg1[%c0_2, %c8] : memref<40x32xf32, #tpu.memory_space<vmem>>, vector<32x1xf32>
    %c0_3 = arith.constant 0 : index
    %c9 = arith.constant 9 : index
    %3 = vector.load %arg1[%c0_3, %c9] : memref<40x32xf32, #tpu.memory_space<vmem>>, vector<8x1xf32>
    %c0_4 = arith.constant 0 : index
    %c10 = arith.constant 10 : index
    %4 = vector.load %arg1[%c0_4, %c10] : memref<40x32xf32, #tpu.memory_space<vmem>>, vector<8x1xf32>
    %c0_5 = arith.constant 0 : index
    %c11 = arith.constant 11 : index
    %5 = vector.load %arg1[%c0_5, %c11] : memref<40x32xf32, #tpu.memory_space<vmem>>, vector<8x1xf32>
    %c0_6 = arith.constant 0 : index
    %c12 = arith.constant 12 : index
    %6 = vector.load %arg1[%c0_6, %c12] : memref<40x32xf32, #tpu.memory_space<vmem>>, vector<8x1xf32>
    %c0_7 = arith.constant 0 : index
    %c13 = arith.constant 13 : index
    %7 = vector.load %arg1[%c0_7, %c13] : memref<40x32xf32, #tpu.memory_space<vmem>>, vector<8x1xf32>
    %8 = tpu.iota {dimensions = array<i32: 1>} : vector<1x256xi32>
    %c15_i32 = arith.constant 15 : i32
    %9 = vector.broadcast %c15_i32 : i32 to vector<1x256xi32>
    %10 = arith.andi %8, %9 : vector<1x256xi32>
    %c4_i32 = arith.constant 4 : i32
    %11 = vector.broadcast %c4_i32 : i32 to vector<1x256xi32>
    %12 = arith.shrsi %8, %11 : vector<1x256xi32>
    %c0_i32 = arith.constant 0 : i32
    %13 = vector.broadcast %c0_i32 : i32 to vector<1x256xi32>
    %14 = arith.cmpi sgt, %10, %13 : vector<1x256xi32>
    %cst = arith.constant 1.000000e+00 : f32
    %cst_8 = arith.constant 0.000000e+00 : f32
    %15 = vector.broadcast %cst : f32 to vector<1x256xf32>
    %16 = vector.broadcast %cst_8 : f32 to vector<1x256xf32>
    %17 = arith.select %14, %15, %16 : vector<1x256xi1>, vector<1x256xf32>
    %c15_i32_9 = arith.constant 15 : i32
    %18 = vector.broadcast %c15_i32_9 : i32 to vector<1x256xi32>
    %19 = arith.cmpi slt, %10, %18 : vector<1x256xi32>
    %cst_10 = arith.constant 1.000000e+00 : f32
    %cst_11 = arith.constant 0.000000e+00 : f32
    %20 = vector.broadcast %cst_10 : f32 to vector<1x256xf32>
    %21 = vector.broadcast %cst_11 : f32 to vector<1x256xf32>
    %22 = arith.select %19, %20, %21 : vector<1x256xi1>, vector<1x256xf32>
    %c0_i32_12 = arith.constant 0 : i32
    %23 = vector.broadcast %c0_i32_12 : i32 to vector<1x256xi32>
    %24 = arith.cmpi sgt, %12, %23 : vector<1x256xi32>
    %cst_13 = arith.constant 1.000000e+00 : f32
    %cst_14 = arith.constant 0.000000e+00 : f32
    %25 = vector.broadcast %cst_13 : f32 to vector<1x256xf32>
    %26 = vector.broadcast %cst_14 : f32 to vector<1x256xf32>
    %27 = arith.select %24, %25, %26 : vector<1x256xi1>, vector<1x256xf32>
    %c15_i32_15 = arith.constant 15 : i32
    %28 = vector.broadcast %c15_i32_15 : i32 to vector<1x256xi32>
    %29 = arith.cmpi slt, %12, %28 : vector<1x256xi32>
    %cst_16 = arith.constant 1.000000e+00 : f32
    %cst_17 = arith.constant 0.000000e+00 : f32
    %30 = vector.broadcast %cst_16 : f32 to vector<1x256xf32>
    %31 = vector.broadcast %cst_17 : f32 to vector<1x256xf32>
    %32 = arith.select %29, %30, %31 : vector<1x256xi1>, vector<1x256xf32>
    %cst_18 = arith.constant 1.000000e+00 : f32
    %33 = vector.broadcast %cst_18 : f32 to vector<1x256xf32>
    %34 = arith.addf %33, %17 : vector<1x256xf32>
    %35 = arith.addf %34, %22 : vector<1x256xf32>
    %cst_19 = arith.constant 1.000000e+00 : f32
    %36 = vector.broadcast %cst_19 : f32 to vector<1x256xf32>
    %37 = arith.addf %36, %27 : vector<1x256xf32>
    %38 = arith.addf %37, %32 : vector<1x256xf32>
    %39 = arith.mulf %35, %38 : vector<1x256xf32>
    %cst_20 = arith.constant 1.000000e+00 : f32
    %40 = vector.broadcast %cst_20 : f32 to vector<1x256xf32>
    %41 = arith.divf %40, %39 : vector<1x256xf32>
    %c0_21 = arith.constant 0 : index
    %c0_22 = arith.constant 0 : index
    %42 = vector.load %arg0[%c0_21, %c0_22] : memref<8x256xf32, #tpu.memory_space<vmem>>, vector<8x256xf32>
    %c2_i32 = arith.constant 2 : i32
    %43 = tpu.dynamic_rotate %42 by %c2_i32 dim 0 : vector<8x256xf32>, i32 -> vector<8x256xf32>
    %44 = arith.addf %42, %43 : vector<8x256xf32>
    %c4_i32_23 = arith.constant 4 : i32
    %45 = tpu.dynamic_rotate %42 by %c4_i32_23 dim 0 : vector<8x256xf32>, i32 -> vector<8x256xf32>
    %46 = arith.addf %44, %45 : vector<8x256xf32>
    %c6_i32 = arith.constant 6 : i32
    %47 = tpu.dynamic_rotate %42 by %c6_i32 dim 0 : vector<8x256xf32>, i32 -> vector<8x256xf32>
    %48 = arith.addf %46, %47 : vector<8x256xf32>
    %cst_24 = arith.constant 2.500000e-01 : f32
    %49 = vector.broadcast %cst_24 : f32 to vector<8x256xf32>
    %50 = arith.mulf %48, %49 : vector<8x256xf32>
    %51 = arith.subf %42, %50 : vector<8x256xf32>
    %52 = arith.mulf %51, %51 : vector<8x256xf32>
    %c2_i32_25 = arith.constant 2 : i32
    %53 = tpu.dynamic_rotate %52 by %c2_i32_25 dim 0 : vector<8x256xf32>, i32 -> vector<8x256xf32>
    %54 = arith.addf %52, %53 : vector<8x256xf32>
    %c4_i32_26 = arith.constant 4 : i32
    %55 = tpu.dynamic_rotate %52 by %c4_i32_26 dim 0 : vector<8x256xf32>, i32 -> vector<8x256xf32>
    %56 = arith.addf %54, %55 : vector<8x256xf32>
    %c6_i32_27 = arith.constant 6 : i32
    %57 = tpu.dynamic_rotate %52 by %c6_i32_27 dim 0 : vector<8x256xf32>, i32 -> vector<8x256xf32>
    %58 = arith.addf %56, %57 : vector<8x256xf32>
    %cst_28 = arith.constant 2.500000e-01 : f32
    %59 = vector.broadcast %cst_28 : f32 to vector<8x256xf32>
    %60 = arith.mulf %58, %59 : vector<8x256xf32>
    %cst_29 = arith.constant 9.99999974E-6 : f32
    %61 = vector.broadcast %cst_29 : f32 to vector<8x256xf32>
    %62 = arith.addf %60, %61 : vector<8x256xf32>
    %63 = math.rsqrt %62 : vector<8x256xf32>
    %64 = arith.mulf %51, %63 : vector<8x256xf32>
    %65 = vector.broadcast %3 : vector<8x1xf32> to vector<8x256xf32>
    %66 = arith.mulf %64, %65 : vector<8x256xf32>
    %67 = vector.broadcast %4 : vector<8x1xf32> to vector<8x256xf32>
    %68 = arith.addf %66, %67 : vector<8x256xf32>
    %c1_i32 = arith.constant 1 : i32
    %69 = tpu.dynamic_rotate %68 by %c1_i32 dim 1 : vector<8x256xf32>, i32 -> vector<8x256xf32>
    %70 = vector.broadcast %17 : vector<1x256xf32> to vector<8x256xf32>
    %71 = arith.mulf %69, %70 : vector<8x256xf32>
    %72 = arith.addf %68, %71 : vector<8x256xf32>
    %c255_i32 = arith.constant 255 : i32
    %73 = tpu.dynamic_rotate %68 by %c255_i32 dim 1 : vector<8x256xf32>, i32 -> vector<8x256xf32>
    %74 = vector.broadcast %22 : vector<1x256xf32> to vector<8x256xf32>
    %75 = arith.mulf %73, %74 : vector<8x256xf32>
    %76 = arith.addf %72, %75 : vector<8x256xf32>
    %c16_i32 = arith.constant 16 : i32
    %77 = tpu.dynamic_rotate %76 by %c16_i32 dim 1 : vector<8x256xf32>, i32 -> vector<8x256xf32>
    %78 = vector.broadcast %27 : vector<1x256xf32> to vector<8x256xf32>
    %79 = arith.mulf %77, %78 : vector<8x256xf32>
    %80 = arith.addf %76, %79 : vector<8x256xf32>
    %c240_i32 = arith.constant 240 : i32
    %81 = tpu.dynamic_rotate %76 by %c240_i32 dim 1 : vector<8x256xf32>, i32 -> vector<8x256xf32>
    %82 = vector.broadcast %32 : vector<1x256xf32> to vector<8x256xf32>
    %83 = arith.mulf %81, %82 : vector<8x256xf32>
    %84 = arith.addf %80, %83 : vector<8x256xf32>
    %85 = vector.broadcast %41 : vector<1x256xf32> to vector<8x256xf32>
    %86 = arith.mulf %84, %85 : vector<8x256xf32>
    %87 = arith.addf %42, %86 : vector<8x256xf32>
    %88 = arith.subf %87, %68 : vector<8x256xf32>
    %c2_i32_30 = arith.constant 2 : i32
    %89 = tpu.dynamic_rotate %88 by %c2_i32_30 dim 0 : vector<8x256xf32>, i32 -> vector<8x256xf32>
    %90 = arith.addf %88, %89 : vector<8x256xf32>
    %c4_i32_31 = arith.constant 4 : i32
    %91 = tpu.dynamic_rotate %88 by %c4_i32_31 dim 0 : vector<8x256xf32>, i32 -> vector<8x256xf32>
    %92 = arith.addf %90, %91 : vector<8x256xf32>
    %c6_i32_32 = arith.constant 6 : i32
    %93 = tpu.dynamic_rotate %88 by %c6_i32_32 dim 0 : vector<8x256xf32>, i32 -> vector<8x256xf32>
    %94 = arith.addf %92, %93 : vector<8x256xf32>
    %cst_33 = arith.constant 2.500000e-01 : f32
    %95 = vector.broadcast %cst_33 : f32 to vector<8x256xf32>
    %96 = arith.mulf %94, %95 : vector<8x256xf32>
    %97 = arith.subf %88, %96 : vector<8x256xf32>
    %98 = arith.mulf %97, %97 : vector<8x256xf32>
    %c2_i32_34 = arith.constant 2 : i32
    %99 = tpu.dynamic_rotate %98 by %c2_i32_34 dim 0 : vector<8x256xf32>, i32 -> vector<8x256xf32>
    %100 = arith.addf %98, %99 : vector<8x256xf32>
    %c4_i32_35 = arith.constant 4 : i32
    %101 = tpu.dynamic_rotate %98 by %c4_i32_35 dim 0 : vector<8x256xf32>, i32 -> vector<8x256xf32>
    %102 = arith.addf %100, %101 : vector<8x256xf32>
    %c6_i32_36 = arith.constant 6 : i32
    %103 = tpu.dynamic_rotate %98 by %c6_i32_36 dim 0 : vector<8x256xf32>, i32 -> vector<8x256xf32>
    %104 = arith.addf %102, %103 : vector<8x256xf32>
    %cst_37 = arith.constant 2.500000e-01 : f32
    %105 = vector.broadcast %cst_37 : f32 to vector<8x256xf32>
    %106 = arith.mulf %104, %105 : vector<8x256xf32>
    %cst_38 = arith.constant 9.99999974E-6 : f32
    %107 = vector.broadcast %cst_38 : f32 to vector<8x256xf32>
    %108 = arith.addf %106, %107 : vector<8x256xf32>
    %109 = math.rsqrt %108 : vector<8x256xf32>
    %110 = arith.mulf %97, %109 : vector<8x256xf32>
    %111 = vector.broadcast %5 : vector<8x1xf32> to vector<8x256xf32>
    %112 = arith.mulf %110, %111 : vector<8x256xf32>
    %113 = vector.broadcast %6 : vector<8x1xf32> to vector<8x256xf32>
    %114 = arith.addf %112, %113 : vector<8x256xf32>
    %cst_39 = arith.constant dense<0.000000e+00> : vector<32x256xf32>
    %115 = tpu.matmul %0, %114, %cst_39 {dimension_numbers = #tpu.dot_dimension_numbers<[1], [0], [0], [1], [0, 0, 1, 1], [], []>} : vector<32x8xf32>, vector<8x256xf32>, vector<32x256xf32> -> vector<32x256xf32>
    %116 = vector.broadcast %2 : vector<32x1xf32> to vector<32x256xf32>
    %117 = arith.addf %115, %116 : vector<32x256xf32>
    %cst_40 = arith.constant 5.000000e-01 : f32
    %118 = vector.broadcast %cst_40 : f32 to vector<32x256xf32>
    %119 = arith.mulf %118, %117 : vector<32x256xf32>
    %cst_41 = arith.constant 0.707106769 : f32
    %120 = vector.broadcast %cst_41 : f32 to vector<32x256xf32>
    %121 = arith.mulf %117, %120 : vector<32x256xf32>
    %122 = math.erf %121 : vector<32x256xf32>
    %cst_42 = arith.constant 1.000000e+00 : f32
    %123 = vector.broadcast %cst_42 : f32 to vector<32x256xf32>
    %124 = arith.addf %123, %122 : vector<32x256xf32>
    %125 = arith.mulf %119, %124 : vector<32x256xf32>
    %cst_43 = arith.constant dense<0.000000e+00> : vector<8x256xf32>
    %126 = tpu.matmul %1, %125, %cst_43 {dimension_numbers = #tpu.dot_dimension_numbers<[1], [0], [0], [1], [0, 0, 1, 1], [], []>} : vector<8x32xf32>, vector<32x256xf32>, vector<8x256xf32> -> vector<8x256xf32>
    %127 = vector.broadcast %7 : vector<8x1xf32> to vector<8x256xf32>
    %128 = arith.addf %126, %127 : vector<8x256xf32>
    %129 = arith.addf %88, %128 : vector<8x256xf32>
    %c0_44 = arith.constant 0 : index
    %c0_45 = arith.constant 0 : index
    %130 = vector.load %arg2[%c0_44, %c0_45] : memref<8x256xf32, #tpu.memory_space<vmem>>, vector<8x256xf32>
    tpu.vector_store %arg2[%c0_44, %c0_45], %129 {strides = array<i32>} : memref<8x256xf32, #tpu.memory_space<vmem>>, vector<8x256xf32>,
    return
  }
}

</mosaic_0001>

<llo_original>
// kernel: tpu_custom_call.1
$region0: #{tpu_custom_call.1}
  #allocation0 [shape = 'u32[]', space=smem, size = 0x4, offset = 0x4, fixed_abs, tag = 'smem constant byte address 0x4 - core index']
  #allocation1 [shape = 'u32[144,128]{1,0:T(1,128)}', space=vmem, size = 0x12000, scoped, tag = 'internal scratch']
  %s0 = inlined_call_operand.vmem [shape: f32[8,256], index: 0, kind: input, shape index: {}]
  %s1 = inlined_call_operand.vmem [shape: f32[40,32], index: 1, kind: input, shape index: {}]
  %s2 = inlined_call_operand.hbm [shape: f32[8,256], index: 2, kind: output, shape index: {}]
  %s3 = sld [smem:[#allocation0]]
  $region18: #{tpu_custom_call.1} parent=0
    _
  %s5 = ssub.s32 1, %s3
  %s6 = scalar_select 0, %s5, %s3
  $region1: #{tpu_custom_call.1} parent=0
    #allocation2 [shape = 'u8[8192]{0}', space=vmem, size = 0x2000, scoped, tag = 'output window, operand 0, single buffered']
    #allocation3 [shape = 's32[1]{0}', space=sflag, size = 0x4, scoped, tag = 'scoped memory for tpu_custom_call.1']
    %7 = vsyncpa [#allocation3], 0
    // Predicated region
    $region2: #{tpu_custom_call.1} parent=1 // pred_check
      _
    $region3: #{tpu_custom_call.1} parent=1 // pred_check_branch
      %9 = sbr.rel (0) target = $region5
    $region4: #{tpu_custom_call.1} parent=1 // pred_region
      _
    $region5: #{tpu_custom_call.1} parent=1 // pred_fallthru
      _
    // Predicated region
    $region6: #{tpu_custom_call.1} parent=1 // pred_check
      _
    $region7: #{tpu_custom_call.1} parent=1 // pred_check_branch
      %11 = sbr.rel (0) target = $region9
    $region8: #{tpu_custom_call.1} parent=1 // pred_region
      _
    $region9: #{tpu_custom_call.1} parent=1 // pred_fallthru
      _
    %v12 = vld [vmem:[%s1] sm:$0xff]
    %v13 = vld [vmem:[%s1 + $0x8] sm:$0xff]
    %v14 = vld [vmem:[%s1 + $0x10] sm:$0xff]
    %v15 = vld [vmem:[%s1 + $0x18] sm:$0xff]
    %v16 = vld [vmem:[%s1 + $0x20] sm:$0xff]
    %v17 = vlaneseq
    %v18 = vand.u32 %v17, 127
    %v19 = vadd.s32 %v18, 128
    %v20 = vand.u32 %v18, 15
    %v21 = vand.u32 %v19, 15
    %v22 = vshra.s32 %v18, 4
    %v23 = vshra.s32 %v19, 4
    %vm24 = vcmp.gt.s32.totalorder %v20, 0
    %vm25 = vcmp.gt.s32.totalorder %v21, 0
    %v26 = vsel %vm24, 1.0, 0.0
    %v27 = vsel %vm25, 1.0, 0.0
    %vm28 = vcmp.lt.s32.totalorder %v20, 15
    %vm29 = vcmp.lt.s32.totalorder %v21, 15
    %v30 = vsel %vm28, 1.0, 0.0
    %v31 = vsel %vm29, 1.0, 0.0
    %vm32 = vcmp.gt.s32.totalorder %v22, 0
    %vm33 = vcmp.gt.s32.totalorder %v23, 0
    %v34 = vsel %vm32, 1.0, 0.0
    %v35 = vsel %vm33, 1.0, 0.0
    %vm36 = vcmp.lt.s32.totalorder %v22, 15
    %vm37 = vcmp.lt.s32.totalorder %v23, 15
    %v38 = vsel %vm36, 1.0, 0.0
    %v39 = vsel %vm37, 1.0, 0.0
    %v40 = vadd.f32 %v26, 1.0
    %v41 = vadd.f32 %v27, 1.0
    %v42 = vadd.f32 %v40, %v30
    %v43 = vadd.f32 %v41, %v31
    %v44 = vadd.f32 %v34, 1.0
    %v45 = vadd.f32 %v35, 1.0
    %v46 = vadd.f32 %v44, %v38
    %v47 = vadd.f32 %v45, %v39
    %v48 = vmul.f32 %v42, %v46
    %v49 = vmul.f32 %v43, %v47
    %v50 = vrcp.pop %v48
    %v51 = vmul.f32 1.0, %v50
    %v52 = vrcp.pop %v49
    %v53 = vmul.f32 1.0, %v52
    %v54 = vld [vmem:[%s0] sm:$0xff]
    %v55 = vld [vmem:[%s0 + $0x8] sm:$0xff]
    %v56 = vrot.slane %v54, 6
    %v57 = vrot.slane %v55, 6
    %v58 = vadd.f32 %v54, %v56
    %v59 = vadd.f32 %v55, %v57
    %v60 = vrot.slane %v54, 4
    %v61 = vrot.slane %v55, 4
    %v62 = vadd.f32 %v58, %v60
    %v63 = vadd.f32 %v59, %v61
    %v64 = vrot.slane %v54, 2
    %v65 = vrot.slane %v55, 2
    %v66 = vadd.f32 %v62, %v64
    %v67 = vadd.f32 %v63, %v65
    %v68 = vmul.f32 %v66, 0.25
    %v69 = vmul.f32 %v67, 0.25
    %v70 = vsub.f32 %v54, %v68
    %v71 = vsub.f32 %v55, %v69
    %v72 = vmul.f32 %v70, %v70
    %v73 = vmul.f32 %v71, %v71
    %v74 = vrot.slane %v72, 6
    %v75 = vrot.slane %v73, 6
    %v76 = vadd.f32 %v72, %v74
    %v77 = vadd.f32 %v73, %v75
    %v78 = vrot.slane %v72, 4
    %v79 = vrot.slane %v73, 4
    %v80 = vadd.f32 %v76, %v78
    %v81 = vadd.f32 %v77, %v79
    %v82 = vrot.slane %v72, 2
    %v83 = vrot.slane %v73, 2
    %v84 = vadd.f32 %v80, %v82
    %v85 = vadd.f32 %v81, %v83
    %v86 = vmul.f32 %v84, 0.25
    %v87 = vmul.f32 %v85, 0.25
    %v88 = vadd.f32 %v86, 1e-05
    %v89 = vadd.f32 %v87, 1e-05
    %v90 = vrsqrt.pop %v88
    %v91 = vrsqrt.pop %v89
    %v92 = vmul.f32 %v70, %v90
    %v93 = vmul.f32 %v71, %v91
    %95 = vset.pattern.permute.xlu0 9
    %96 = vperm.xlu0 %95, %v12
    %v97 = vpop.permute.xlu0 %96
    %v99 = vmul.f32 %v92, %v97
    %v100 = vmul.f32 %v93, %v97
    %101 = vset.pattern.permute.xlu0 10
    %102 = vperm.xlu0 %101, %v12
    %v103 = vpop.permute.xlu0 %102
    %v105 = vadd.f32 %v99, %v103
    %v106 = vadd.f32 %v100, %v103
    %107 = vrot.lane.b32.xlu0 %v105, 1
    %v108 = vpop.permute.xlu0 %107
    %109 = vrot.lane.b32.xlu0 %v106, 1
    %v110 = vpop.permute.xlu0 %109
    %vm111 = vcmp.lt.s32.totalorder %v18, 1
    %v112 = vsel %vm111, %v108, %v110
    %v113 = vsel %vm111, %v110, %v108
    %v114 = vmul.f32 %v113, %v26
    %v115 = vmul.f32 %v112, %v27
    %v116 = vadd.f32 %v105, %v114
    %v117 = vadd.f32 %v106, %v115
    %118 = vrot.lane.b32.xlu0 %v105, 127
    %v119 = vpop.permute.xlu0 %118
    %120 = vrot.lane.b32.xlu0 %v106, 127
    %v121 = vpop.permute.xlu0 %120
    %vm122 = vcmp.lt.s32.totalorder %v18, 127
    %v123 = vsel %vm122, %v119, %v121
    %v124 = vsel %vm122, %v121, %v119
    %v125 = vmul.f32 %v123, %v30
    %v126 = vmul.f32 %v124, %v31
    %v127 = vadd.f32 %v116, %v125
    %v128 = vadd.f32 %v117, %v126
    %129 = vrot.lane.b32.xlu0 %v127, 16
    %v130 = vpop.permute.xlu0 %129
    %131 = vrot.lane.b32.xlu0 %v128, 16
    %v132 = vpop.permute.xlu0 %131
    %vm133 = vcmp.lt.s32.totalorder %v18, 16
    %v134 = vsel %vm133, %v130, %v132
    %v135 = vsel %vm133, %v132, %v130
    %v136 = vmul.f32 %v135, %v34
    %v137 = vmul.f32 %v134, %v35
    %v138 = vadd.f32 %v127, %v136
    %v139 = vadd.f32 %v128, %v137
    %140 = vrot.lane.b32.xlu0 %v127, 112
    %v141 = vpop.permute.xlu0 %140
    %142 = vrot.lane.b32.xlu0 %v128, 112
    %v143 = vpop.permute.xlu0 %142
    %vm144 = vcmp.lt.s32.totalorder %v18, 112
    %v145 = vsel %vm144, %v141, %v143
    %v146 = vsel %vm144, %v143, %v141
    %v147 = vmul.f32 %v145, %v38
    %v148 = vmul.f32 %v146, %v39
    %v149 = vadd.f32 %v138, %v147
    %v150 = vadd.f32 %v139, %v148
    %v151 = vmul.f32 %v149, %v51
    %v152 = vmul.f32 %v150, %v53
    %v153 = vadd.f32 %v54, %v151
    %v154 = vadd.f32 %v55, %v152
    %v155 = vsub.f32 %v153, %v105
    %v156 = vsub.f32 %v154, %v106
    %v157 = vrot.slane %v155, 6
    %v158 = vrot.slane %v156, 6
    %v159 = vadd.f32 %v155, %v157
    %v160 = vadd.f32 %v156, %v158
    %v161 = vrot.slane %v155, 4
    %v162 = vrot.slane %v156, 4
    %v163 = vadd.f32 %v159, %v161
    %v164 = vadd.f32 %v160, %v162
    %v165 = vrot.slane %v155, 2
    %v166 = vrot.slane %v156, 2
    %v167 = vadd.f32 %v163, %v165
    %v168 = vadd.f32 %v164, %v166
    %v169 = vmul.f32 %v167, 0.25
    %v170 = vmul.f32 %v168, 0.25
    %v171 = vsub.f32 %v155, %v169
    %v172 = vsub.f32 %v156, %v170
    %v173 = vmul.f32 %v171, %v171
    %v174 = vmul.f32 %v172, %v172
    %v175 = vrot.slane %v173, 6
    %v176 = vrot.slane %v174, 6
    %v177 = vadd.f32 %v173, %v175
    %v178 = vadd.f32 %v174, %v176
    %v179 = vrot.slane %v173, 4
    %v180 = vrot.slane %v174, 4
    %v181 = vadd.f32 %v177, %v179
    %v182 = vadd.f32 %v178, %v180
    %v183 = vrot.slane %v173, 2
    %v184 = vrot.slane %v174, 2
    %v185 = vadd.f32 %v181, %v183
    %v186 = vadd.f32 %v182, %v184
    %v187 = vmul.f32 %v185, 0.25
    %v188 = vmul.f32 %v186, 0.25
    %v189 = vadd.f32 %v187, 1e-05
    %v190 = vadd.f32 %v188, 1e-05
    %v191 = vrsqrt.pop %v189
    %v192 = vrsqrt.pop %v190
    %v193 = vmul.f32 %v171, %v191
    %v194 = vmul.f32 %v172, %v192
    %195 = vset.pattern.permute.xlu0 11
    %196 = vperm.xlu0 %195, %v12
    %v197 = vpop.permute.xlu0 %196
    %v199 = vmul.f32 %v193, %v197
    %v200 = vmul.f32 %v194, %v197
    %201 = vset.pattern.permute.xlu0 12
    %202 = vperm.xlu0 %201, %v12
    %v203 = vpop.permute.xlu0 %202
    %v205 = vadd.f32 %v199, %v203
    %v206 = vadd.f32 %v200, %v203
    %207 = vset.pattern.permute.xlu0 8
    %208 = vperm.xlu0 %207, %v12
    %v209 = vpop.permute.xlu0 %208
    %212 = vset.pattern.permute.xlu0 8
    %213 = vperm.xlu0 %212, %v13
    %v214 = vpop.permute.xlu0 %213
    %217 = vset.pattern.permute.xlu0 8
    %218 = vperm.xlu0 %217, %v14
    %v219 = vpop.permute.xlu0 %218
    %222 = vset.pattern.permute.xlu0 8
    %223 = vperm.xlu0 %222, %v15
    %v224 = vpop.permute.xlu0 %223
    %vm226 = vcmask 64512
    %v227 = vsel %vm226, %v12, 0
    %v229 = vsel %vm226, %v13, 0
    %v231 = vsel %vm226, %v14, 0
    %v233 = vsel %vm226, %v15, 0
    %235 = vmatprep.subr.mxu0 %v206
    %236 = vmatpush1.msra.mxu0 %v205
    %237 = vmatprep.subr.mxu0 0.0
    %238 = vmatpush1.msra.mxu0 0.0
    %239 = vmatprep.subr.mxu0 0.0
    %240 = vmatpush1.msra.mxu0 0.0
    %241 = vmatprep.subr.mxu0 0.0
    %242 = vmatpush1.msra.mxu0 0.0
    %243 = vmatprep.subr.mxu0 0.0
    %244 = vmatpush1.msra.mxu0 0.0
    %245 = vmatprep.subr.mxu0 0.0
    %246 = vmatpush1.msra.mxu0 0.0
    %247 = vmatprep.subr.mxu0 0.0
    %248 = vmatpush1.msra.mxu0 0.0
    %249 = vmatprep.subr.mxu0 0.0
    %250 = vmatpush1.msra.mxu0 0.0
    %251 = vmatprep.subr.mxu0 0.0
    %252 = vmatpush1.msra.mxu0 0.0
    %253 = vmatprep.subr.mxu0 0.0
    %254 = vmatpush1.msra.mxu0 0.0
    %255 = vmatprep.subr.mxu0 0.0
    %256 = vmatpush1.msra.mxu0 0.0
    %257 = vmatprep.subr.mxu0 0.0
    %258 = vmatpush1.msra.mxu0 0.0
    %259 = vmatprep.subr.mxu0 0.0
    %260 = vmatpush1.msra.mxu0 0.0
    %261 = vmatprep.subr.mxu0 0.0
    %262 = vmatpush1.msra.mxu0 0.0
    %263 = vmatprep.subr.mxu0 0.0
    %264 = vmatpush1.msra.mxu0 0.0
    %265 = vmatprep.subr.mxu0 0.0
    %266 = vmatpush1.msra.mxu0 0.0
    %267 = vmatprep.subr.mxu0 0.0
    %268 = vmatpush1.msra.mxu0 0.0
    %269 = vmatprep.subr.mxu0 0.0
    %270 = vmatpush1.msra.mxu0 0.0
    %271 = vmatprep.subr.mxu0 0.0
    %272 = vmatpush1.msra.mxu0 0.0
    %273 = vmatprep.subr.mxu0 0.0
    %274 = vmatpush1.msra.mxu0 0.0
    %275 = vmatprep.subr.mxu0 0.0
    %276 = vmatpush1.msra.mxu0 0.0
    %277 = vmatprep.subr.mxu0 0.0
    %278 = vmatpush1.msra.mxu0 0.0
    %279 = vmatprep.subr.mxu0 0.0
    %280 = vmatpush1.msra.mxu0 0.0
    %281 = vmatprep.subr.mxu0 0.0
    %282 = vmatpush1.msra.mxu0 0.0
    %283 = vmatprep.subr.mxu0 0.0
    %284 = vmatpush1.msra.mxu0 0.0
    %285 = vmatprep.subr.mxu0 0.0
    %286 = vmatpush1.msra.mxu0 0.0
    %287 = vmatprep.subr.mxu0 0.0
    %288 = vmatpush1.msra.mxu0 0.0
    %289 = vmatprep.subr.mxu0 0.0
    %290 = vmatpush1.msra.mxu0 0.0
    %291 = vmatprep.subr.mxu0 0.0
    %292 = vmatpush1.msra.mxu0 0.0
    %293 = vmatprep.subr.mxu0 0.0
    %294 = vmatpush1.msra.mxu0 0.0
    %295 = vmatprep.subr.mxu0 0.0
    %296 = vmatpush1.msra.mxu0 0.0
    %297 = vmatprep.subr.mxu0 0.0
    %298 = vmatpush1.msra.mxu0 0.0
    %299 = vmatprep.mubr.f32.mxu0 0.0
    %300 = vmatmul.mubr.f32.gmra.mrb[0].mxu0 %v227
    %v301 = vpop.f32.mrb[0].mxu0
    %v302 = vadd.f32 %v209, %v301
    %v303 = vpop.f32.mrb[0].mxu0
    %v304 = vadd.f32 %v209, %v303
    %305 = vmatprep.mubr.f32.mxu0 0.0
    %306 = vmatmul.mubr.f32.gmra.mrb[0].mxu0 %v229
    %v307 = vpop.f32.mrb[0].mxu0
    %v308 = vadd.f32 %v214, %v307
    %v309 = vpop.f32.mrb[0].mxu0
    %v310 = vadd.f32 %v214, %v309
    %311 = vmatprep.mubr.f32.mxu0 0.0
    %312 = vmatmul.mubr.f32.gmra.mrb[0].mxu0 %v231
    %v313 = vpop.f32.mrb[0].mxu0
    %v314 = vadd.f32 %v219, %v313
    %v315 = vpop.f32.mrb[0].mxu0
    %v316 = vadd.f32 %v219, %v315
    %317 = vmatprep.mubr.f32.mxu0 0.0
    %318 = vmatmul.mubr.f32.gmra.mrb[0].mxu0 %v233
    %v319 = vpop.f32.mrb[0].mxu0
    %v320 = vadd.f32 %v224, %v319
    %v321 = vpop.f32.mrb[0].mxu0
    %v322 = vadd.f32 %v224, %v321
    %323 = vdwg.mxu0
    %v324 = vmul.f32 %v302, 0.5
    %v325 = vmul.f32 %v304, 0.5
    %v326 = vmul.f32 %v308, 0.5
    %v327 = vmul.f32 %v310, 0.5
    %v328 = vmul.f32 %v314, 0.5
    %v329 = vmul.f32 %v316, 0.5
    %v330 = vmul.f32 %v320, 0.5
    %v331 = vmul.f32 %v322, 0.5
    %v332 = vmul.f32 %v302, 0.70710677
    %v333 = vmul.f32 %v304, 0.70710677
    %v334 = vmul.f32 %v308, 0.70710677
    %v335 = vmul.f32 %v310, 0.70710677
    %v336 = vmul.f32 %v314, 0.70710677
    %v337 = vmul.f32 %v316, 0.70710677
    %v338 = vmul.f32 %v320, 0.70710677
    %v339 = vmul.f32 %v322, 0.70710677
    %v340 = verf.f32.pop %v332
    %v341 = verf.f32.pop %v333
    %v342 = verf.f32.pop %v334
    %v343 = verf.f32.pop %v335
    %v344 = verf.f32.pop %v336
    %v345 = verf.f32.pop %v337
    %v346 = verf.f32.pop %v338
    %v347 = verf.f32.pop %v339
    %v348 = vadd.f32 %v340, 1.0
    %v349 = vadd.f32 %v341, 1.0
    %v350 = vadd.f32 %v342, 1.0
    %v351 = vadd.f32 %v343, 1.0
    %v352 = vadd.f32 %v344, 1.0
    %v353 = vadd.f32 %v345, 1.0
    %v354 = vadd.f32 %v346, 1.0
    %v355 = vadd.f32 %v347, 1.0
    %v356 = vmul.f32 %v324, %v348
    %v357 = vmul.f32 %v325, %v349
    %v358 = vmul.f32 %v326, %v350
    %v359 = vmul.f32 %v327, %v351
    %v360 = vmul.f32 %v328, %v352
    %v361 = vmul.f32 %v329, %v353
    %v362 = vmul.f32 %v330, %v354
    %v363 = vmul.f32 %v331, %v355
    %364 = vset.pattern.permute.xlu0 13
    %365 = vperm.xlu0 %364, %v12
    %v366 = vpop.permute.xlu0 %365
    %vm368 = vcmask 261120
    %v370 = vsel %vm368, %v16, 0
    %372 = vmatprep.subr.mxu0 %v357
    %373 = vmatpush1.msra.mxu0 %v356
    %374 = vmatprep.subr.mxu0 %v359
    %375 = vmatpush1.msra.mxu0 %v358
    %376 = vmatprep.subr.mxu0 %v361
    %377 = vmatpush1.msra.mxu0 %v360
    %378 = vmatprep.subr.mxu0 %v363
    %379 = vmatpush1.msra.mxu0 %v362
    %380 = vmatprep.subr.mxu0 0.0
    %381 = vmatpush1.msra.mxu0 0.0
    %382 = vmatprep.subr.mxu0 0.0
    %383 = vmatpush1.msra.mxu0 0.0
    %384 = vmatprep.subr.mxu0 0.0
    %385 = vmatpush1.msra.mxu0 0.0
    %386 = vmatprep.subr.mxu0 0.0
    %387 = vmatpush1.msra.mxu0 0.0
    %388 = vmatprep.subr.mxu0 0.0
    %389 = vmatpush1.msra.mxu0 0.0
    %390 = vmatprep.subr.mxu0 0.0
    %391 = vmatpush1.msra.mxu0 0.0
    %392 = vmatprep.subr.mxu0 0.0
    %393 = vmatpush1.msra.mxu0 0.0
    %394 = vmatprep.subr.mxu0 0.0
    %395 = vmatpush1.msra.mxu0 0.0
    %396 = vmatprep.subr.mxu0 0.0
    %397 = vmatpush1.msra.mxu0 0.0
    %398 = vmatprep.subr.mxu0 0.0
    %399 = vmatpush1.msra.mxu0 0.0
    %400 = vmatprep.subr.mxu0 0.0
    %401 = vmatpush1.msra.mxu0 0.0
    %402 = vmatprep.subr.mxu0 0.0
    %403 = vmatpush1.msra.mxu0 0.0
    %404 = vmatprep.subr.mxu0 0.0
    %405 = vmatpush1.msra.mxu0 0.0
    %406 = vmatprep.subr.mxu0 0.0
    %407 = vmatpush1.msra.mxu0 0.0
    %408 = vmatprep.subr.mxu0 0.0
    %409 = vmatpush1.msra.mxu0 0.0
    %410 = vmatprep.subr.mxu0 0.0
    %411 = vmatpush1.msra.mxu0 0.0
    %412 = vmatprep.subr.mxu0 0.0
    %413 = vmatpush1.msra.mxu0 0.0
    %414 = vmatprep.subr.mxu0 0.0
    %415 = vmatpush1.msra.mxu0 0.0
    %416 = vmatprep.subr.mxu0 0.0
    %417 = vmatpush1.msra.mxu0 0.0
    %418 = vmatprep.subr.mxu0 0.0
    %419 = vmatpush1.msra.mxu0 0.0
    %420 = vmatprep.subr.mxu0 0.0
    %421 = vmatpush1.msra.mxu0 0.0
    %422 = vmatprep.subr.mxu0 0.0
    %423 = vmatpush1.msra.mxu0 0.0
    %424 = vmatprep.subr.mxu0 0.0
    %425 = vmatpush1.msra.mxu0 0.0
    %426 = vmatprep.subr.mxu0 0.0
    %427 = vmatpush1.msra.mxu0 0.0
    %428 = vmatprep.subr.mxu0 0.0
    %429 = vmatpush1.msra.mxu0 0.0
    %430 = vmatprep.subr.mxu0 0.0
    %431 = vmatpush1.msra.mxu0 0.0
    %432 = vmatprep.subr.mxu0 0.0
    %433 = vmatpush1.msra.mxu0 0.0
    %434 = vmatprep.subr.mxu0 0.0
    %435 = vmatpush1.msra.mxu0 0.0
    %436 = vmatprep.mubr.f32.mxu0 0.0
    %437 = vmatmul.mubr.f32.gmra.mrb[0].mxu0 %v370
    %v438 = vpop.f32.mrb[0].mxu0
    %v439 = vadd.f32 %v366, %v438
    %v440 = vpop.f32.mrb[0].mxu0
    %v441 = vadd.f32 %v366, %v440
    %442 = vdwg.mxu0
    %v443 = vadd.f32 %v155, %v439
    %v444 = vadd.f32 %v156, %v441
    %445 = vst [vmem:[#allocation2] sm:$0xff] %v443
    %446 = vst [vmem:[#allocation2 + $0x8] sm:$0xff] %v444
    // Predicated region
    $region10: #{tpu_custom_call.1} parent=1 // pred_check
      _
    $region11: #{tpu_custom_call.1} parent=1 // pred_check_branch
      %448 = sbr.rel (0) target = $region13
    $region12: #{tpu_custom_call.1} parent=1 // pred_region
      %s450 = ssub.s32 256, 256
      %451 = vsyncadd [#allocation3], %s450
      %s453 = sshll.u32 [#allocation2], 4
      %s454 = int_to_ptr.vmem [resolvable:$true] %s453
      %456 = dma.vmem_to_hbm [thread:$0]  %s454, 256, %s2, [#allocation3]
    $region13: #{tpu_custom_call.1} parent=1 // pred_fallthru
      _
    // Predicated region
    $region14: #{tpu_custom_call.1} parent=1 // pred_check
      _
    $region15: #{tpu_custom_call.1} parent=1 // pred_check_branch
      %458 = sbr.rel (0) target = $region17
    $region16: #{tpu_custom_call.1} parent=1 // pred_region
      %459 = dma.done [#allocation3], 256
    $region17: #{tpu_custom_call.1} parent=1 // pred_fallthru
      _
    %460 = vsyncpa [#allocation3], 1

</llo_original>
